<compile_context>
chip_gen: v6e
topology: v6e:2x2x1
jax: 0.10.0
libtpu: 0.0.40
codegen_flags: <defaults>
</compile_context>

<pallas_src>
import functools

import jax
import jax.numpy as jnp
from jax.experimental import pallas as pl
from jax.experimental.pallas import tpu as pltpu

LANE = 128     # vreg lane width
SUBLANE = 8    # vreg sublane height


def _round_up(n, m):
    return ((n + m - 1) // m) * m


def dqn_kernel(x_ref, w1_ref, w23_ref, b_ref, o_ref, *, hid_p):
    """One batch tile of the fused 3-layer MLP.

    Matmuls run on the MXU with f32 accumulation; bias-add / ReLU run on the VPU in f32.
      x_ref   : [TILE_B, num_inputs]  (f32, cast to the MXU dtype in-kernel)
      w1_ref  : [num_inputs, hid_p]   (bf16/f32)
      w23_ref : [2, hid_p, wcols]     (bf16/f32)  -- stacked, zero-padded W2, W3
      b_ref   : [3, wcols]            (f32)       -- stacked, zero-padded b1, b2, b3
      o_ref   : [TILE_B, wcols]       (f32)       -- lane-dense (wcols is a multiple of 128)
    """
    w_dtype = w1_ref.dtype
    x = x_ref[...].astype(w_dtype)

    h1 = jnp.dot(x, w1_ref[...], preferred_element_type=jnp.float32)
    h1 = jnp.maximum(h1 + b_ref[0:1, 0:hid_p], 0.0).astype(w_dtype)      # [TILE_B, hid_p]

    h2 = jnp.dot(h1, w23_ref[0], preferred_element_type=jnp.float32)
    h2 = jnp.maximum(h2 + b_ref[1:2, :], 0.0).astype(w_dtype)            # [TILE_B, wcols]
    if h2.shape[1] != hid_p:      # only if actions were padded wider than hidden
        h2 = h2[:, :hid_p]

    q = jnp.dot(h2, w23_ref[1], preferred_element_type=jnp.float32) + b_ref[2:3, :]
    o_ref[...] = q.astype(o_ref.dtype)                                   # [TILE_B, wcols]


def prepare_dqn_params(params, use_bf16=True):
    """One-time cast + lane-pad + stack of the DQN parameters (hoisted out of the
    per-call path). Returned arrays are reused across dqn_forward calls."""
    num_inputs, hidden = params["w1"].shape
    num_actions = params["w3"].shape[1]
    hid_p = _round_up(hidden, LANE)
    wcols = max(hid_p, _round_up(num_actions, LANE))
    mxu_dtype = jnp.bfloat16 if use_bf16 else jnp.float32

    def pad2(a, rows, cols, dtype):
        a = jnp.asarray(a, dtype)
        return jnp.pad(a, ((0, rows - a.shape[0]), (0, cols - a.shape[1])))

    w1_p = pad2(params["w1"], num_inputs, hid_p, mxu_dtype)              # [in, hid_p]
    w23_p = jnp.stack([pad2(params["w2"], hid_p, wcols, mxu_dtype),
                       pad2(params["w3"], hid_p, wcols, mxu_dtype)])     # [2, hid_p, wcols]
    bias_p = jnp.concatenate([pad2(params["b1"], 1, wcols, jnp.float32),
                              pad2(params["b2"], 1, wcols, jnp.float32),
                              pad2(params["b3"], 1, wcols, jnp.float32)],
                             axis=0)                                     # [3, wcols]
    return {
        "w1": jax.device_put(w1_p),
        "w23": jax.device_put(w23_p),
        "bias": jax.device_put(bias_p),
        "num_actions": num_actions,
    }


def default_tile_b(batch):
    """One grid step per TensorCore: 1 step on v5e/v6e (single TC), 2 on v7x (2 TCs)."""
    kind = jax.devices()[0].device_kind.lower()
    num_tc = 2 if ("v7" in kind or "7x" in kind) else 1
    return max(SUBLANE, _round_up(-(-batch // num_tc), SUBLANE))


@functools.partial(jax.jit, static_argnames=("num_actions", "tile_b"))
def dqn_forward(x, w1_p, w23_p, bias_p, *, num_actions, tile_b):
    """x: [B, num_inputs] f32; padded params from prepare_dqn_params.
    Returns [B, num_actions] f32 (same semantics as the PyTorch DQN forward)."""
    B, num_inputs = x.shape
    hid_p = w1_p.shape[1]
    wcols = w23_p.shape[2]

    b_pad = _round_up(B, tile_b)
    if b_pad != B:                      # no-op in the common case (B divides evenly)
        x = jnp.pad(x, ((0, b_pad - B), (0, 0)))
    n_steps = b_pad // tile_b

    itemsize = jnp.dtype(w1_p.dtype).itemsize
    flops = 2 * b_pad * (num_inputs * hid_p + 2 * hid_p * wcols)
    bytes_accessed = (b_pad * num_inputs * 4
                      + (w1_p.size + w23_p.size) * itemsize
                      + bias_p.size * 4
                      + b_pad * wcols * 4)

    const2 = lambda i: (0, 0)           # weights/biases: same block every step -> VMEM-resident

    out = pl.pallas_call(
        functools.partial(dqn_kernel, hid_p=hid_p),
        out_shape=jax.ShapeDtypeStruct((b_pad, wcols), jnp.float32),
        grid=(n_steps,),
        in_specs=[
            pl.BlockSpec((tile_b, num_inputs), lambda i: (i, 0)),   # x: batch-tiled, pipelined
            pl.BlockSpec((num_inputs, hid_p), const2),              # W1
            pl.BlockSpec((2, hid_p, wcols), lambda i: (0, 0, 0)),   # W2, W3 stacked
            pl.BlockSpec((3, wcols), const2),                       # b1, b2, b3 stacked
        ],
        out_specs=pl.BlockSpec((tile_b, wcols), lambda i: (i, 0)),
        compiler_params=pltpu.CompilerParams(
            dimension_semantics=("parallel",)),                     # v7x shards the batch tiles
        cost_estimate=pl.CostEstimate(flops=int(flops), transcendentals=0,
                                      bytes_accessed=int(bytes_accessed)),
    )(x, w1_p, w23_p, bias_p)

    # Slice away batch padding and zero-filled action columns BEFORE any argmax/policy use.
    return out[:B, :num_actions]


def init_dqn_params(key, num_inputs, num_actions, hidden):
    """PyTorch nn.Linear default init (U(-1/sqrt(fan_in), +)). Weights stored transposed
    to [in, out]; biases as [1, out]."""
    def linear(k, fan_in, fan_out):
        kw, kb = jax.random.split(k)
        bound = 1.0 / (fan_in ** 0.5)
        w = jax.random.uniform(kw, (fan_in, fan_out), jnp.float32, -bound, bound)
        b = jax.random.uniform(kb, (1, fan_out), jnp.float32, -bound, bound)
        return w, b

    k1, k2, k3 = jax.random.split(key, 3)
    w1, b1 = linear(k1, num_inputs, hidden)
    w2, b2 = linear(k2, hidden, hidden)
    w3, b3 = linear(k3, hidden, num_actions)
    return {"w1": w1, "b1": b1, "w2": w2, "b2": b2, "w3": w3, "b3": b3}


def dqn_reference(x, p):
    h1 = jnp.maximum(x @ p["w1"] + p["b1"], 0.0)
    h2 = jnp.maximum(h1 @ p["w2"] + p["b2"], 0.0)
    return h2 @ p["w3"] + p["b3"]


if __name__ == "__main__":
    # Gym DQN shapes: CartPole-like obs dim 4, 2 actions, hidden 32, replay-batch 256.
    B, NUM_INPUTS, NUM_ACTIONS, HIDDEN = 256, 4, 2, 32

    key = jax.random.PRNGKey(0)
    kx, kp = jax.random.split(key)
    x = jax.random.normal(kx, (B, NUM_INPUTS), dtype=jnp.float32)
    params = init_dqn_params(kp, NUM_INPUTS, NUM_ACTIONS, HIDDEN)
    ref = dqn_reference(x, params)

    tile_b = default_tile_b(B)

    # bf16 MXU path (recommended default on v5e/v6e/v7x).
    prepped = prepare_dqn_params(params, use_bf16=True)
    out = dqn_forward(x, prepped["w1"], prepped["w23"], prepped["bias"],
                      num_actions=prepped["num_actions"], tile_b=tile_b)
    jax.block_until_ready(out)
    assert out.shape == (B, NUM_ACTIONS)
    # bf16 operands with f32 accumulation -> small tolerance vs the f32 reference.
    assert jnp.allclose(out, ref, atol=3e-2, rtol=3e-2), "mismatch vs reference (bf16 path)"

    # Exact-f32 path must match tightly.
    prepped32 = prepare_dqn_params(params, use_bf16=False)
    out_f32 = dqn_forward(x, prepped32["w1"], prepped32["w23"], prepped32["bias"],
                          num_actions=prepped32["num_actions"], tile_b=tile_b)
    jax.block_until_ready(out_f32)
    assert jnp.allclose(out_f32, ref, atol=1e-5, rtol=1e-5), "mismatch vs reference (f32 path)"

    print("KERNEL_OK")
</pallas_src>

<mosaic_0001>
module attributes {stable_mosaic.version = 11 : i64} {
  func.func @dqn_kernel(%arg0: i32, %arg1: memref<256x4xf32, #tpu.memory_space<vmem>>, %arg2: memref<4x128xbf16, #tpu.memory_space<vmem>>, %arg3: memref<2x128x128xbf16, #tpu.memory_space<vmem>>, %arg4: memref<3x128xf32, #tpu.memory_space<vmem>>, %arg5: memref<256x128xf32, #tpu.memory_space<vmem>>) attributes {dimension_semantics = [#tpu.dimension_semantics<parallel>], iteration_bounds = array<i64: 1>, scalar_prefetch = 0 : i64, scratch_operands = 0 : i64, tpu.core_type = #tpu.core_type<tc>, window_params = [{transform_indices = @transform_0, window_bounds = array<i64: 256, 4>}, {pipeline_mode = #tpu.pipeline_mode<synchronous>, transform_indices = @transform_1, window_bounds = array<i64: 4, 128>}, {pipeline_mode = #tpu.pipeline_mode<synchronous>, transform_indices = @transform_2, window_bounds = array<i64: 2, 128, 128>}, {pipeline_mode = #tpu.pipeline_mode<synchronous>, transform_indices = @transform_3, window_bounds = array<i64: 3, 128>}, {transform_indices = @transform_4, window_bounds = array<i64: 256, 128>}]} {
    %c0 = arith.constant 0 : index
    %c0_0 = arith.constant 0 : index
    %0 = vector.load %arg1[%c0, %c0_0] : memref<256x4xf32, #tpu.memory_space<vmem>>, vector<256x4xf32>
    %1 = arith.truncf %0 : vector<256x4xf32> to vector<256x4xbf16>
    %c0_1 = arith.constant 0 : index
    %c0_2 = arith.constant 0 : index
    %2 = vector.load %arg2[%c0_1, %c0_2] : memref<4x128xbf16, #tpu.memory_space<vmem>>, vector<4x128xbf16>
    %cst = arith.constant dense<0.000000e+00> : vector<256x128xf32>
    %3 = tpu.matmul %1, %2, %cst {dimension_numbers = #tpu.dot_dimension_numbers<[1], [0], [0], [1], [0, 0, 1, 1], [], []>} : vector<256x4xbf16>, vector<4x128xbf16>, vector<256x128xf32> -> vector<256x128xf32>
    %c0_3 = arith.constant 0 : index
    %c0_4 = arith.constant 0 : index
    %4 = vector.load %arg4[%c0_3, %c0_4] : memref<3x128xf32, #tpu.memory_space<vmem>>, vector<1x128xf32>
    %5 = vector.broadcast %4 : vector<1x128xf32> to vector<256x128xf32>
    %6 = arith.addf %3, %5 : vector<256x128xf32>
    %cst_5 = arith.constant 0.000000e+00 : f32
    %7 = vector.broadcast %cst_5 : f32 to vector<256x128xf32>
    %8 = arith.maximumf %6, %7 : vector<256x128xf32>
    %9 = arith.truncf %8 : vector<256x128xf32> to vector<256x128xbf16>
    %c0_6 = arith.constant 0 : index
    %c0_7 = arith.constant 0 : index
    %c0_8 = arith.constant 0 : index
    %10 = vector.load %arg3[%c0_6, %c0_7, %c0_8] : memref<2x128x128xbf16, #tpu.memory_space<vmem>>, vector<1x128x128xbf16>
    %11 = vector.shape_cast %10 : vector<1x128x128xbf16> to vector<128x128xbf16>
    %cst_9 = arith.constant dense<0.000000e+00> : vector<256x128xf32>
    %12 = tpu.matmul %9, %11, %cst_9 {dimension_numbers = #tpu.dot_dimension_numbers<[1], [0], [0], [1], [0, 0, 1, 1], [], []>} : vector<256x128xbf16>, vector<128x128xbf16>, vector<256x128xf32> -> vector<256x128xf32>
    %c1 = arith.constant 1 : index
    %c0_10 = arith.constant 0 : index
    %13 = vector.load %arg4[%c1, %c0_10] : memref<3x128xf32, #tpu.memory_space<vmem>>, vector<1x128xf32>
    %14 = vector.broadcast %13 : vector<1x128xf32> to vector<256x128xf32>
    %15 = arith.addf %12, %14 : vector<256x128xf32>
    %cst_11 = arith.constant 0.000000e+00 : f32
    %16 = vector.broadcast %cst_11 : f32 to vector<256x128xf32>
    %17 = arith.maximumf %15, %16 : vector<256x128xf32>
    %18 = arith.truncf %17 : vector<256x128xf32> to vector<256x128xbf16>
    %c1_12 = arith.constant 1 : index
    %c0_13 = arith.constant 0 : index
    %c0_14 = arith.constant 0 : index
    %19 = vector.load %arg3[%c1_12, %c0_13, %c0_14] : memref<2x128x128xbf16, #tpu.memory_space<vmem>>, vector<1x128x128xbf16>
    %20 = vector.shape_cast %19 : vector<1x128x128xbf16> to vector<128x128xbf16>
    %cst_15 = arith.constant dense<0.000000e+00> : vector<256x128xf32>
    %21 = tpu.matmul %18, %20, %cst_15 {dimension_numbers = #tpu.dot_dimension_numbers<[1], [0], [0], [1], [0, 0, 1, 1], [], []>} : vector<256x128xbf16>, vector<128x128xbf16>, vector<256x128xf32> -> vector<256x128xf32>
    %c2 = arith.constant 2 : index
    %c0_16 = arith.constant 0 : index
    %22 = vector.load %arg4[%c2, %c0_16] : memref<3x128xf32, #tpu.memory_space<vmem>>, vector<1x128xf32>
    %23 = vector.broadcast %22 : vector<1x128xf32> to vector<256x128xf32>
    %24 = arith.addf %21, %23 : vector<256x128xf32>
    %c0_17 = arith.constant 0 : index
    %c0_18 = arith.constant 0 : index
    %25 = vector.load %arg5[%c0_17, %c0_18] : memref<256x128xf32, #tpu.memory_space<vmem>>, vector<256x128xf32>
    tpu.vector_store %arg5[%c0_17, %c0_18], %24 {strides = array<i32>} : memref<256x128xf32, #tpu.memory_space<vmem>>, vector<256x128xf32>,
    return
  }
  func.func @transform_0(%arg0: i32) -> (i32, i32) {
    %c0_i32 = arith.constant 0 : i32
    %c0_i32_0 = arith.constant 0 : i32
    return %arg0, %c0_i32 : i32, i32
  }
  func.func @transform_1(%arg0: i32) -> (i32, i32) {
    %c0_i32 = arith.constant 0 : i32
    %c0_i32_0 = arith.constant 0 : i32
    %c0_i32_1 = arith.constant 0 : i32
    return %c0_i32, %c0_i32_0 : i32, i32
  }
  func.func @transform_2(%arg0: i32) -> (i32, i32, i32) {
    %c0_i32 = arith.constant 0 : i32
    %c0_i32_0 = arith.constant 0 : i32
    %c0_i32_1 = arith.constant 0 : i32
    %c0_i32_2 = arith.constant 0 : i32
    return %c0_i32, %c0_i32_0, %c0_i32_1 : i32, i32, i32
  }
  func.func @transform_3(%arg0: i32) -> (i32, i32) {
    %c0_i32 = arith.constant 0 : i32
    %c0_i32_0 = arith.constant 0 : i32
    %c0_i32_1 = arith.constant 0 : i32
    return %c0_i32, %c0_i32_0 : i32, i32
  }
  func.func @transform_4(%arg0: i32) -> (i32, i32) {
    %c0_i32 = arith.constant 0 : i32
    %c0_i32_0 = arith.constant 0 : i32
    return %arg0, %c0_i32 : i32, i32
  }
}

</mosaic_0001>

<llo_original>
// kernel: dqn_forward.1
$region0: #{dqn_forward.1}
  #allocation0 [shape = 'u32[]', space=smem, size = 0x4, offset = 0x4, fixed_abs, tag = 'smem constant byte address 0x4 - core index']
  #allocation1 [shape = 'u32[144,128]{1,0:T(1,128)}', space=vmem, size = 0x12000, scoped, tag = 'internal scratch']
  %s0 = inlined_call_operand.vmem [shape: f32[256,4], index: 0, kind: input, shape index: {}]
  %s1 = inlined_call_operand.vmem [shape: bf16[4,128], index: 1, kind: input, shape index: {}]
  %s2 = inlined_call_operand.vmem [shape: bf16[2,128,128], index: 2, kind: input, shape index: {}]
  %s3 = inlined_call_operand.vmem [shape: f32[3,128], index: 3, kind: input, shape index: {}]
  %s4 = inlined_call_operand.vmem [shape: f32[256,128], index: 4, kind: output, shape index: {}]
  %s5 = sld [smem:[#allocation0]]
  $region26: #{dqn_forward.1} parent=0
    _
  %s7 = ssub.s32 1, %s5
  %s8 = scalar_select 0, %s7, %s5
  // Predicated region
  $region2: #{dqn_forward.1} parent=0 // pred_check
    _
  $region3: #{dqn_forward.1} parent=0 // pred_check_branch
    %10 = sbr.rel (0) target = $region5
  $region4: #{dqn_forward.1} parent=0 // pred_region
    _
  $region5: #{dqn_forward.1} parent=0 // pred_fallthru
    _
  // Predicated region
  $region6: #{dqn_forward.1} parent=0 // pred_check
    _
  $region7: #{dqn_forward.1} parent=0 // pred_check_branch
    %12 = sbr.rel (0) target = $region9
  $region8: #{dqn_forward.1} parent=0 // pred_region
    _
  $region9: #{dqn_forward.1} parent=0 // pred_fallthru
    _
  // Predicated region
  $region10: #{dqn_forward.1} parent=0 // pred_check
    _
  $region11: #{dqn_forward.1} parent=0 // pred_check_branch
    %14 = sbr.rel (0) target = $region13
  $region12: #{dqn_forward.1} parent=0 // pred_region
    _
  $region13: #{dqn_forward.1} parent=0 // pred_fallthru
    _
  // Predicated region
  $region14: #{dqn_forward.1} parent=0 // pred_check
    _
  $region15: #{dqn_forward.1} parent=0 // pred_check_branch
    %16 = sbr.rel (0) target = $region17
  $region16: #{dqn_forward.1} parent=0 // pred_region
    _
  $region17: #{dqn_forward.1} parent=0 // pred_fallthru
    _
  %v18 = vld [vmem:[%s0] sm:$0xff]
  %v19 = vld [vmem:[%s0 + $0x8] sm:$0xff]
  %v20 = vld [vmem:[%s0 + $0x10] sm:$0xff]
  %v21 = vld [vmem:[%s0 + $0x18] sm:$0xff]
  %v22 = vld [vmem:[%s0 + $0x20] sm:$0xff]
  %v23 = vld [vmem:[%s0 + $0x28] sm:$0xff]
  %v24 = vld [vmem:[%s0 + $0x30] sm:$0xff]
  %v25 = vld [vmem:[%s0 + $0x38] sm:$0xff]
  %v26 = vld [vmem:[%s0 + $0x40] sm:$0xff]
  %v27 = vld [vmem:[%s0 + $0x48] sm:$0xff]
  %v28 = vld [vmem:[%s0 + $0x50] sm:$0xff]
  %v29 = vld [vmem:[%s0 + $0x58] sm:$0xff]
  %v30 = vld [vmem:[%s0 + $0x60] sm:$0xff]
  %v31 = vld [vmem:[%s0 + $0x68] sm:$0xff]
  %v32 = vld [vmem:[%s0 + $0x70] sm:$0xff]
  %v33 = vld [vmem:[%s0 + $0x78] sm:$0xff]
  %v34 = vld [vmem:[%s0 + $0x80] sm:$0xff]
  %v35 = vld [vmem:[%s0 + $0x88] sm:$0xff]
  %v36 = vld [vmem:[%s0 + $0x90] sm:$0xff]
  %v37 = vld [vmem:[%s0 + $0x98] sm:$0xff]
  %v38 = vld [vmem:[%s0 + $0xa0] sm:$0xff]
  %v39 = vld [vmem:[%s0 + $0xa8] sm:$0xff]
  %v40 = vld [vmem:[%s0 + $0xb0] sm:$0xff]
  %v41 = vld [vmem:[%s0 + $0xb8] sm:$0xff]
  %v42 = vld [vmem:[%s0 + $0xc0] sm:$0xff]
  %v43 = vld [vmem:[%s0 + $0xc8] sm:$0xff]
  %v44 = vld [vmem:[%s0 + $0xd0] sm:$0xff]
  %v45 = vld [vmem:[%s0 + $0xd8] sm:$0xff]
  %v46 = vld [vmem:[%s0 + $0xe0] sm:$0xff]
  %v47 = vld [vmem:[%s0 + $0xe8] sm:$0xff]
  %v48 = vld [vmem:[%s0 + $0xf0] sm:$0xff]
  %v49 = vld [vmem:[%s0 + $0xf8] sm:$0xff]
  %v50 = vpack.c.bf16 %v19, %v18
  %v51 = vpack.c.bf16 %v21, %v20
  %v52 = vpack.c.bf16 %v23, %v22
  %v53 = vpack.c.bf16 %v25, %v24
  %v54 = vpack.c.bf16 %v27, %v26
  %v55 = vpack.c.bf16 %v29, %v28
  %v56 = vpack.c.bf16 %v31, %v30
  %v57 = vpack.c.bf16 %v33, %v32
  %v58 = vpack.c.bf16 %v35, %v34
  %v59 = vpack.c.bf16 %v37, %v36
  %v60 = vpack.c.bf16 %v39, %v38
  %v61 = vpack.c.bf16 %v41, %v40
  %v62 = vpack.c.bf16 %v43, %v42
  %v63 = vpack.c.bf16 %v45, %v44
  %v64 = vpack.c.bf16 %v47, %v46
  %v65 = vpack.c.bf16 %v49, %v48
  %v66 = vld [vmem:[%s1] sm:$0x3]
  %v67 = vld [vmem:[%s3] sm:$0x1]
  %v68 = vlaneseq
  %v69 = vshrl.u32 %v68, 7
  %v70 = vsub.s32 0, %v69
  %v71 = vrot.slane %v67, %v70
  %vm72 = vcmask 31744
  %v74 = vsel %vm72, %v50, 0
  %v77 = vsel %vm72, %v51, 0
  %v80 = vsel %vm72, %v52, 0
  %v83 = vsel %vm72, %v53, 0
  %v86 = vsel %vm72, %v54, 0
  %v89 = vsel %vm72, %v55, 0
  %v92 = vsel %vm72, %v56, 0
  %v95 = vsel %vm72, %v57, 0
  %v98 = vsel %vm72, %v58, 0
  %v101 = vsel %vm72, %v59, 0
  %v104 = vsel %vm72, %v60, 0
  %v107 = vsel %vm72, %v61, 0
  %v110 = vsel %vm72, %v62, 0
  %v113 = vsel %vm72, %v63, 0
  %v116 = vsel %vm72, %v64, 0
  %v119 = vsel %vm72, %v65, 0
  %vm121 = vcmask 1041408
  %v123 = vsel %vm121, %v66, 0
  %125 = vmatprep.subr.bf16.mxu0 0
  %126 = vmatpush1.bf16.msra.mxu0 0
  %127 = vmatprep.subr.bf16.mxu0 0
  %128 = vmatpush1.bf16.msra.mxu0 0
  %129 = vmatprep.subr.bf16.mxu0 0
  %130 = vmatpush1.bf16.msra.mxu0 0
  %131 = vmatprep.subr.bf16.mxu0 0
  %132 = vmatpush1.bf16.msra.mxu0 0
  %133 = vmatprep.subr.bf16.mxu0 0
  %134 = vmatpush1.bf16.msra.mxu0 0
  %135 = vmatprep.subr.bf16.mxu0 0
  %136 = vmatpush1.bf16.msra.mxu0 0
  %137 = vmatprep.subr.bf16.mxu0 0
  %138 = vmatpush1.bf16.msra.mxu0 0
  %139 = vmatprep.subr.bf16.mxu0 0
  %140 = vmatpush1.bf16.msra.mxu0 %v123
  %141 = vmatprep.subr.bf16.mxu0 0
  %142 = vmatpush2.bf16.msra.mxu0 0
  %143 = vmatprep.subr.bf16.mxu0 0
  %144 = vmatpush2.bf16.msra.mxu0 0
  %145 = vmatprep.subr.bf16.mxu0 0
  %146 = vmatpush2.bf16.msra.mxu0 0
  %147 = vmatprep.subr.bf16.mxu0 0
  %148 = vmatpush2.bf16.msra.mxu0 0
  %149 = vmatprep.subr.bf16.mxu0 0
  %150 = vmatpush2.bf16.msra.mxu0 0
  %151 = vmatprep.subr.bf16.mxu0 0
  %152 = vmatpush2.bf16.msra.mxu0 0
  %153 = vmatprep.subr.bf16.mxu0 0
  %154 = vmatpush2.bf16.msra.mxu0 0
  %155 = vmatprep.subr.bf16.mxu0 0
  %156 = vmatpush2.bf16.msra.mxu0 0
  %157 = vmatprep.mubr.bf16.mxu0 0
  %158 = vmatmul.mubr.bf16.gmra.mxu0 %v74
  %v159 = vpop.f32.mrf.mxu0
  %v160 = vadd.f32 %v71, %v159
  %v161 = vpop.f32.mrf.mxu0
  %v162 = vpop.f32.mrf.mxu0
  %v163 = vadd.f32 %v71, %v162
  %v164 = vpop.f32.mrf.mxu0
  %165 = vmatprep.mubr.bf16.mxu0 0
  %166 = vmatmul.mubr.bf16.gmra.mxu0 %v77
  %v167 = vpop.f32.mrf.mxu0
  %v168 = vadd.f32 %v71, %v167
  %v169 = vpop.f32.mrf.mxu0
  %v170 = vpop.f32.mrf.mxu0
  %v171 = vadd.f32 %v71, %v170
  %v172 = vpop.f32.mrf.mxu0
  %173 = vmatprep.mubr.bf16.mxu0 0
  %174 = vmatmul.mubr.bf16.gmra.mxu0 %v80
  %v175 = vpop.f32.mrf.mxu0
  %v176 = vadd.f32 %v71, %v175
  %v177 = vpop.f32.mrf.mxu0
  %v178 = vpop.f32.mrf.mxu0
  %v179 = vadd.f32 %v71, %v178
  %v180 = vpop.f32.mrf.mxu0
  %181 = vmatprep.mubr.bf16.mxu0 0
  %182 = vmatmul.mubr.bf16.gmra.mxu0 %v83
  %v183 = vpop.f32.mrf.mxu0
  %v184 = vadd.f32 %v71, %v183
  %v185 = vpop.f32.mrf.mxu0
  %v186 = vpop.f32.mrf.mxu0
  %v187 = vadd.f32 %v71, %v186
  %v188 = vpop.f32.mrf.mxu0
  %189 = vmatprep.mubr.bf16.mxu0 0
  %190 = vmatmul.mubr.bf16.gmra.mxu0 %v86
  %v191 = vpop.f32.mrf.mxu0
  %v192 = vadd.f32 %v71, %v191
  %v193 = vpop.f32.mrf.mxu0
  %v194 = vpop.f32.mrf.mxu0
  %v195 = vadd.f32 %v71, %v194
  %v196 = vpop.f32.mrf.mxu0
  %197 = vmatprep.mubr.bf16.mxu0 0
  %198 = vmatmul.mubr.bf16.gmra.mxu0 %v89
  %v199 = vpop.f32.mrf.mxu0
  %v200 = vadd.f32 %v71, %v199
  %v201 = vpop.f32.mrf.mxu0
  %v202 = vpop.f32.mrf.mxu0
  %v203 = vadd.f32 %v71, %v202
  %v204 = vpop.f32.mrf.mxu0
  %205 = vmatprep.mubr.bf16.mxu0 0
  %206 = vmatmul.mubr.bf16.gmra.mxu0 %v92
  %v207 = vpop.f32.mrf.mxu0
  %v208 = vadd.f32 %v71, %v207
  %v209 = vpop.f32.mrf.mxu0
  %v210 = vpop.f32.mrf.mxu0
  %v211 = vadd.f32 %v71, %v210
  %v212 = vpop.f32.mrf.mxu0
  %213 = vmatprep.mubr.bf16.mxu0 0
  %214 = vmatmul.mubr.bf16.gmra.mxu0 %v95
  %v215 = vpop.f32.mrf.mxu0
  %v216 = vadd.f32 %v71, %v215
  %v217 = vpop.f32.mrf.mxu0
  %v218 = vpop.f32.mrf.mxu0
  %v219 = vadd.f32 %v71, %v218
  %v220 = vpop.f32.mrf.mxu0
  %221 = vmatprep.mubr.bf16.mxu0 0
  %222 = vmatmul.mubr.bf16.gmra.mxu0 %v98
  %v223 = vpop.f32.mrf.mxu0
  %v224 = vadd.f32 %v71, %v223
  %v225 = vpop.f32.mrf.mxu0
  %v226 = vpop.f32.mrf.mxu0
  %v227 = vadd.f32 %v71, %v226
  %v228 = vpop.f32.mrf.mxu0
  %229 = vmatprep.mubr.bf16.mxu0 0
  %230 = vmatmul.mubr.bf16.gmra.mxu0 %v101
  %v231 = vpop.f32.mrf.mxu0
  %v232 = vadd.f32 %v71, %v231
  %v233 = vpop.f32.mrf.mxu0
  %v234 = vpop.f32.mrf.mxu0
  %v235 = vadd.f32 %v71, %v234
  %v236 = vpop.f32.mrf.mxu0
  %237 = vmatprep.mubr.bf16.mxu0 0
  %238 = vmatmul.mubr.bf16.gmra.mxu0 %v104
  %v239 = vpop.f32.mrf.mxu0
  %v240 = vadd.f32 %v71, %v239
  %v241 = vpop.f32.mrf.mxu0
  %v242 = vpop.f32.mrf.mxu0
  %v243 = vadd.f32 %v71, %v242
  %v244 = vpop.f32.mrf.mxu0
  %245 = vmatprep.mubr.bf16.mxu0 0
  %246 = vmatmul.mubr.bf16.gmra.mxu0 %v107
  %v247 = vpop.f32.mrf.mxu0
  %v248 = vadd.f32 %v71, %v247
  %v249 = vpop.f32.mrf.mxu0
  %v250 = vpop.f32.mrf.mxu0
  %v251 = vadd.f32 %v71, %v250
  %v252 = vpop.f32.mrf.mxu0
  %253 = vmatprep.mubr.bf16.mxu0 0
  %254 = vmatmul.mubr.bf16.gmra.mxu0 %v110
  %v255 = vpop.f32.mrf.mxu0
  %v256 = vadd.f32 %v71, %v255
  %v257 = vpop.f32.mrf.mxu0
  %v258 = vpop.f32.mrf.mxu0
  %v259 = vadd.f32 %v71, %v258
  %v260 = vpop.f32.mrf.mxu0
  %261 = vmatprep.mubr.bf16.mxu0 0
  %262 = vmatmul.mubr.bf16.gmra.mxu0 %v113
  %v263 = vpop.f32.mrf.mxu0
  %v264 = vadd.f32 %v71, %v263
  %v265 = vpop.f32.mrf.mxu0
  %v266 = vpop.f32.mrf.mxu0
  %v267 = vadd.f32 %v71, %v266
  %v268 = vpop.f32.mrf.mxu0
  %269 = vmatprep.mubr.bf16.mxu0 0
  %270 = vmatmul.mubr.bf16.gmra.mxu0 %v116
  %v271 = vpop.f32.mrf.mxu0
  %v272 = vadd.f32 %v71, %v271
  %v273 = vpop.f32.mrf.mxu0
  %v274 = vpop.f32.mrf.mxu0
  %v275 = vadd.f32 %v71, %v274
  %v276 = vpop.f32.mrf.mxu0
  %277 = vmatprep.mubr.bf16.mxu0 0
  %278 = vmatmul.mubr.bf16.gmra.mxu0 %v119
  %v279 = vpop.f32.mrf.mxu0
  %v280 = vadd.f32 %v71, %v279
  %v281 = vpop.f32.mrf.mxu0
  %v282 = vpop.f32.mrf.mxu0
  %v283 = vadd.f32 %v71, %v282
  %v284 = vpop.f32.mrf.mxu0
  %285 = vdwg.mxu0
  %v286 = vmax.f32 %v160, 0.0
  %v287 = vmax.f32 %v163, 0.0
  %v288 = vmax.f32 %v168, 0.0
  %v289 = vmax.f32 %v171, 0.0
  %v290 = vmax.f32 %v176, 0.0
  %v291 = vmax.f32 %v179, 0.0
  %v292 = vmax.f32 %v184, 0.0
  %v293 = vmax.f32 %v187, 0.0
  %v294 = vmax.f32 %v192, 0.0
  %v295 = vmax.f32 %v195, 0.0
  %v296 = vmax.f32 %v200, 0.0
  %v297 = vmax.f32 %v203, 0.0
  %v298 = vmax.f32 %v208, 0.0
  %v299 = vmax.f32 %v211, 0.0
  %v300 = vmax.f32 %v216, 0.0
  %v301 = vmax.f32 %v219, 0.0
  %v302 = vmax.f32 %v224, 0.0
  %v303 = vmax.f32 %v227, 0.0
  %v304 = vmax.f32 %v232, 0.0
  %v305 = vmax.f32 %v235, 0.0
  %v306 = vmax.f32 %v240, 0.0
  %v307 = vmax.f32 %v243, 0.0
  %v308 = vmax.f32 %v248, 0.0
  %v309 = vmax.f32 %v251, 0.0
  %v310 = vmax.f32 %v256, 0.0
  %v311 = vmax.f32 %v259, 0.0
  %v312 = vmax.f32 %v264, 0.0
  %v313 = vmax.f32 %v267, 0.0
  %v314 = vmax.f32 %v272, 0.0
  %v315 = vmax.f32 %v275, 0.0
  %v316 = vmax.f32 %v280, 0.0
  %v317 = vmax.f32 %v283, 0.0
  %v318 = vpack.c.bf16 %v287, %v286
  %v319 = vpack.c.bf16 %v289, %v288
  %v320 = vpack.c.bf16 %v291, %v290
  %v321 = vpack.c.bf16 %v293, %v292
  %v322 = vpack.c.bf16 %v295, %v294
  %v323 = vpack.c.bf16 %v297, %v296
  %v324 = vpack.c.bf16 %v299, %v298
  %v325 = vpack.c.bf16 %v301, %v300
  %v326 = vpack.c.bf16 %v303, %v302
  %v327 = vpack.c.bf16 %v305, %v304
  %v328 = vpack.c.bf16 %v307, %v306
  %v329 = vpack.c.bf16 %v309, %v308
  %v330 = vpack.c.bf16 %v311, %v310
  %v331 = vpack.c.bf16 %v313, %v312
  %v332 = vpack.c.bf16 %v315, %v314
  %v333 = vpack.c.bf16 %v317, %v316
  %v334 = vld [vmem:[%s2] sm:$0xf]
  %v335 = vld [vmem:[%s2 + $0x4] sm:$0xf]
  %v336 = vld [vmem:[%s2 + $0x8] sm:$0xf]
  %v337 = vld [vmem:[%s2 + $0xc] sm:$0xf]
  %v338 = vld [vmem:[%s2 + $0x10] sm:$0xf]
  %v339 = vld [vmem:[%s2 + $0x14] sm:$0xf]
  %v340 = vld [vmem:[%s2 + $0x18] sm:$0xf]
  %v341 = vld [vmem:[%s2 + $0x1c] sm:$0xf]
  %v342 = vld [vmem:[%s2 + $0x20] sm:$0xf]
  %v343 = vld [vmem:[%s2 + $0x24] sm:$0xf]
  %v344 = vld [vmem:[%s2 + $0x28] sm:$0xf]
  %v345 = vld [vmem:[%s2 + $0x2c] sm:$0xf]
  %v346 = vld [vmem:[%s2 + $0x30] sm:$0xf]
  %v347 = vld [vmem:[%s2 + $0x34] sm:$0xf]
  %v348 = vld [vmem:[%s2 + $0x38] sm:$0xf]
  %v349 = vld [vmem:[%s2 + $0x3c] sm:$0xf]
  %v350 = vld [vmem:[%s3 + $0x1] sm:$0x1]
  %v351 = vlaneseq
  %v352 = vshrl.u32 %v351, 7
  %v353 = vsub.s32 0, %v352
  %v354 = vrot.slane %v350, %v353
  %v371 = vunpack.c.l.b16 %v334
  %v372 = vunpack.c.l.b16 %v335
  %v373 = vunpack.c.l.b16 %v336
  %v374 = vunpack.c.l.b16 %v337
  %v375 = vunpack.c.l.b16 %v338
  %v376 = vunpack.c.l.b16 %v339
  %v377 = vunpack.c.l.b16 %v340
  %v378 = vunpack.c.l.b16 %v341
  %v379 = vunpack.c.l.b16 %v342
  %v380 = vunpack.c.l.b16 %v343
  %v381 = vunpack.c.l.b16 %v344
  %v382 = vunpack.c.l.b16 %v345
  %v383 = vunpack.c.l.b16 %v346
  %v384 = vunpack.c.l.b16 %v347
  %v385 = vunpack.c.l.b16 %v348
  %v386 = vunpack.c.l.b16 %v349
  %v387 = vpack.c.b16 %v372, %v371
  %v388 = vpack.c.b16 %v374, %v373
  %v389 = vpack.c.b16 %v376, %v375
  %v390 = vpack.c.b16 %v378, %v377
  %v391 = vpack.c.b16 %v380, %v379
  %v392 = vpack.c.b16 %v382, %v381
  %v393 = vpack.c.b16 %v384, %v383
  %v394 = vpack.c.b16 %v386, %v385
  %403 = vmatprep.subr.bf16.mxu0 0
  %404 = vmatpush1.bf16.msra.mxu0 %v394
  %405 = vmatprep.subr.bf16.mxu0 0
  %406 = vmatpush1.bf16.msra.mxu0 %v393
  %407 = vmatprep.subr.bf16.mxu0 0
  %408 = vmatpush1.bf16.msra.mxu0 %v392
  %409 = vmatprep.subr.bf16.mxu0 0
  %410 = vmatpush1.bf16.msra.mxu0 %v391
  %411 = vmatprep.subr.bf16.mxu0 0
  %412 = vmatpush1.bf16.msra.mxu0 %v390
  %413 = vmatprep.subr.bf16.mxu0 0
  %414 = vmatpush1.bf16.msra.mxu0 %v389
  %415 = vmatprep.subr.bf16.mxu0 0
  %416 = vmatpush1.bf16.msra.mxu0 %v388
  %417 = vmatprep.subr.bf16.mxu0 0
  %418 = vmatpush1.bf16.msra.mxu0 %v387
  %419 = vmatprep.subr.bf16.mxu0 0
  %420 = vmatpush2.bf16.msra.mxu0 0
  %421 = vmatprep.subr.bf16.mxu0 0
  %422 = vmatpush2.bf16.msra.mxu0 0
  %423 = vmatprep.subr.bf16.mxu0 0
  %424 = vmatpush2.bf16.msra.mxu0 0
  %425 = vmatprep.subr.bf16.mxu0 0
  %426 = vmatpush2.bf16.msra.mxu0 0
  %427 = vmatprep.subr.bf16.mxu0 0
  %428 = vmatpush2.bf16.msra.mxu0 0
  %429 = vmatprep.subr.bf16.mxu0 0
  %430 = vmatpush2.bf16.msra.mxu0 0
  %431 = vmatprep.subr.bf16.mxu0 0
  %432 = vmatpush2.bf16.msra.mxu0 0
  %433 = vmatprep.subr.bf16.mxu0 0
  %434 = vmatpush2.bf16.msra.mxu0 0
  %435 = vmatprep.mubr.bf16.mxu0 0
  %436 = vmatmul.mubr.bf16.gmra.mxu0 %v318
  %v437 = vpop.f32.mrf.mxu0
  %v438 = vadd.f32 %v354, %v437
  %v439 = vpop.f32.mrf.mxu0
  %v440 = vpop.f32.mrf.mxu0
  %v441 = vadd.f32 %v354, %v440
  %v442 = vpop.f32.mrf.mxu0
  %443 = vmatprep.mubr.bf16.mxu0 0
  %444 = vmatmul.mubr.bf16.gmra.mxu0 %v319
  %v445 = vpop.f32.mrf.mxu0
  %v446 = vadd.f32 %v354, %v445
  %v447 = vpop.f32.mrf.mxu0
  %v448 = vpop.f32.mrf.mxu0
  %v449 = vadd.f32 %v354, %v448
  %v450 = vpop.f32.mrf.mxu0
  %451 = vmatprep.mubr.bf16.mxu0 0
  %452 = vmatmul.mubr.bf16.gmra.mxu0 %v320
  %v453 = vpop.f32.mrf.mxu0
  %v454 = vadd.f32 %v354, %v453
  %v455 = vpop.f32.mrf.mxu0
  %v456 = vpop.f32.mrf.mxu0
  %v457 = vadd.f32 %v354, %v456
  %v458 = vpop.f32.mrf.mxu0
  %459 = vmatprep.mubr.bf16.mxu0 0
  %460 = vmatmul.mubr.bf16.gmra.mxu0 %v321
  %v461 = vpop.f32.mrf.mxu0
  %v462 = vadd.f32 %v354, %v461
  %v463 = vpop.f32.mrf.mxu0
  %v464 = vpop.f32.mrf.mxu0
  %v465 = vadd.f32 %v354, %v464
  %v466 = vpop.f32.mrf.mxu0
  %467 = vmatprep.mubr.bf16.mxu0 0
  %468 = vmatmul.mubr.bf16.gmra.mxu0 %v322
  %v469 = vpop.f32.mrf.mxu0
  %v470 = vadd.f32 %v354, %v469
  %v471 = vpop.f32.mrf.mxu0
  %v472 = vpop.f32.mrf.mxu0
  %v473 = vadd.f32 %v354, %v472
  %v474 = vpop.f32.mrf.mxu0
  %475 = vmatprep.mubr.bf16.mxu0 0
  %476 = vmatmul.mubr.bf16.gmra.mxu0 %v323
  %v477 = vpop.f32.mrf.mxu0
  %v478 = vadd.f32 %v354, %v477
  %v479 = vpop.f32.mrf.mxu0
  %v480 = vpop.f32.mrf.mxu0
  %v481 = vadd.f32 %v354, %v480
  %v482 = vpop.f32.mrf.mxu0
  %483 = vmatprep.mubr.bf16.mxu0 0
  %484 = vmatmul.mubr.bf16.gmra.mxu0 %v324
  %v485 = vpop.f32.mrf.mxu0
  %v486 = vadd.f32 %v354, %v485
  %v487 = vpop.f32.mrf.mxu0
  %v488 = vpop.f32.mrf.mxu0
  %v489 = vadd.f32 %v354, %v488
  %v490 = vpop.f32.mrf.mxu0
  %491 = vmatprep.mubr.bf16.mxu0 0
  %492 = vmatmul.mubr.bf16.gmra.mxu0 %v325
  %v493 = vpop.f32.mrf.mxu0
  %v494 = vadd.f32 %v354, %v493
  %v495 = vpop.f32.mrf.mxu0
  %v496 = vpop.f32.mrf.mxu0
  %v497 = vadd.f32 %v354, %v496
  %v498 = vpop.f32.mrf.mxu0
  %499 = vmatprep.mubr.bf16.mxu0 0
  %500 = vmatmul.mubr.bf16.gmra.mxu0 %v326
  %v501 = vpop.f32.mrf.mxu0
  %v502 = vadd.f32 %v354, %v501
  %v503 = vpop.f32.mrf.mxu0
  %v504 = vpop.f32.mrf.mxu0
  %v505 = vadd.f32 %v354, %v504
  %v506 = vpop.f32.mrf.mxu0
  %507 = vmatprep.mubr.bf16.mxu0 0
  %508 = vmatmul.mubr.bf16.gmra.mxu0 %v327
  %v509 = vpop.f32.mrf.mxu0
  %v510 = vadd.f32 %v354, %v509
  %v511 = vpop.f32.mrf.mxu0
  %v512 = vpop.f32.mrf.mxu0
  %v513 = vadd.f32 %v354, %v512
  %v514 = vpop.f32.mrf.mxu0
  %515 = vmatprep.mubr.bf16.mxu0 0
  %516 = vmatmul.mubr.bf16.gmra.mxu0 %v328
  %v517 = vpop.f32.mrf.mxu0
  %v518 = vadd.f32 %v354, %v517
  %v519 = vpop.f32.mrf.mxu0
  %v520 = vpop.f32.mrf.mxu0
  %v521 = vadd.f32 %v354, %v520
  %v522 = vpop.f32.mrf.mxu0
  %523 = vmatprep.mubr.bf16.mxu0 0
  %524 = vmatmul.mubr.bf16.gmra.mxu0 %v329
  %v525 = vpop.f32.mrf.mxu0
  %v526 = vadd.f32 %v354, %v525
  %v527 = vpop.f32.mrf.mxu0
  %v528 = vpop.f32.mrf.mxu0
  %v529 = vadd.f32 %v354, %v528
  %v530 = vpop.f32.mrf.mxu0
  %531 = vmatprep.mubr.bf16.mxu0 0
  %532 = vmatmul.mubr.bf16.gmra.mxu0 %v330
  %v533 = vpop.f32.mrf.mxu0
  %v534 = vadd.f32 %v354, %v533
  %v535 = vpop.f32.mrf.mxu0
  %v536 = vpop.f32.mrf.mxu0
  %v537 = vadd.f32 %v354, %v536
  %v538 = vpop.f32.mrf.mxu0
  %539 = vmatprep.mubr.bf16.mxu0 0
  %540 = vmatmul.mubr.bf16.gmra.mxu0 %v331
  %v541 = vpop.f32.mrf.mxu0
  %v542 = vadd.f32 %v354, %v541
  %v543 = vpop.f32.mrf.mxu0
  %v544 = vpop.f32.mrf.mxu0
  %v545 = vadd.f32 %v354, %v544
  %v546 = vpop.f32.mrf.mxu0
  %547 = vmatprep.mubr.bf16.mxu0 0
  %548 = vmatmul.mubr.bf16.gmra.mxu0 %v332
  %v549 = vpop.f32.mrf.mxu0
  %v550 = vadd.f32 %v354, %v549
  %v551 = vpop.f32.mrf.mxu0
  %v552 = vpop.f32.mrf.mxu0
  %v553 = vadd.f32 %v354, %v552
  %v554 = vpop.f32.mrf.mxu0
  %555 = vmatprep.mubr.bf16.mxu0 0
  %556 = vmatmul.mubr.bf16.gmra.mxu0 %v333
  %v557 = vpop.f32.mrf.mxu0
  %v558 = vadd.f32 %v354, %v557
  %v559 = vpop.f32.mrf.mxu0
  %v560 = vpop.f32.mrf.mxu0
  %v561 = vadd.f32 %v354, %v560
  %v562 = vpop.f32.mrf.mxu0
  %563 = vdwg.mxu0
  %v564 = vmax.f32 %v438, 0.0
  %v565 = vmax.f32 %v441, 0.0
  %v566 = vmax.f32 %v446, 0.0
  %v567 = vmax.f32 %v449, 0.0
  %v568 = vmax.f32 %v454, 0.0
  %v569 = vmax.f32 %v457, 0.0
  %v570 = vmax.f32 %v462, 0.0
  %v571 = vmax.f32 %v465, 0.0
  %v572 = vmax.f32 %v470, 0.0
  %v573 = vmax.f32 %v473, 0.0
  %v574 = vmax.f32 %v478, 0.0
  %v575 = vmax.f32 %v481, 0.0
  %v576 = vmax.f32 %v486, 0.0
  %v577 = vmax.f32 %v489, 0.0
  %v578 = vmax.f32 %v494, 0.0
  %v579 = vmax.f32 %v497, 0.0
  %v580 = vmax.f32 %v502, 0.0
  %v581 = vmax.f32 %v505, 0.0
  %v582 = vmax.f32 %v510, 0.0
  %v583 = vmax.f32 %v513, 0.0
  %v584 = vmax.f32 %v518, 0.0
  %v585 = vmax.f32 %v521, 0.0
  %v586 = vmax.f32 %v526, 0.0
  %v587 = vmax.f32 %v529, 0.0
  %v588 = vmax.f32 %v534, 0.0
  %v589 = vmax.f32 %v537, 0.0
  %v590 = vmax.f32 %v542, 0.0
  %v591 = vmax.f32 %v545, 0.0
  %v592 = vmax.f32 %v550, 0.0
  %v593 = vmax.f32 %v553, 0.0
  %v594 = vmax.f32 %v558, 0.0
  %v595 = vmax.f32 %v561, 0.0
  %v596 = vpack.c.bf16 %v565, %v564
  %v597 = vpack.c.bf16 %v567, %v566
  %v598 = vpack.c.bf16 %v569, %v568
  %v599 = vpack.c.bf16 %v571, %v570
  %v600 = vpack.c.bf16 %v573, %v572
  %v601 = vpack.c.bf16 %v575, %v574
  %v602 = vpack.c.bf16 %v577, %v576
  %v603 = vpack.c.bf16 %v579, %v578
  %v604 = vpack.c.bf16 %v581, %v580
  %v605 = vpack.c.bf16 %v583, %v582
  %v606 = vpack.c.bf16 %v585, %v584
  %v607 = vpack.c.bf16 %v587, %v586
  %v608 = vpack.c.bf16 %v589, %v588
  %v609 = vpack.c.bf16 %v591, %v590
  %v610 = vpack.c.bf16 %v593, %v592
  %v611 = vpack.c.bf16 %v595, %v594
  %s612 = scalar_lea.vmem %s2, 64
  %v613 = vld [vmem:[%s612] sm:$0xf]
  %v614 = vld [vmem:[%s612 + $0x4] sm:$0xf]
  %v615 = vld [vmem:[%s612 + $0x8] sm:$0xf]
  %v616 = vld [vmem:[%s612 + $0xc] sm:$0xf]
  %v617 = vld [vmem:[%s612 + $0x10] sm:$0xf]
  %v618 = vld [vmem:[%s612 + $0x14] sm:$0xf]
  %v619 = vld [vmem:[%s612 + $0x18] sm:$0xf]
  %v620 = vld [vmem:[%s612 + $0x1c] sm:$0xf]
  %v621 = vld [vmem:[%s612 + $0x20] sm:$0xf]
  %v622 = vld [vmem:[%s612 + $0x24] sm:$0xf]
  %v623 = vld [vmem:[%s612 + $0x28] sm:$0xf]
  %v624 = vld [vmem:[%s612 + $0x2c] sm:$0xf]
  %v625 = vld [vmem:[%s612 + $0x30] sm:$0xf]
  %v626 = vld [vmem:[%s612 + $0x34] sm:$0xf]
  %v627 = vld [vmem:[%s612 + $0x38] sm:$0xf]
  %v628 = vld [vmem:[%s612 + $0x3c] sm:$0xf]
  %v629 = vld [vmem:[%s3 + $0x2] sm:$0x1]
  %v630 = vlaneseq
  %v631 = vshrl.u32 %v630, 7
  %v632 = vsub.s32 0, %v631
  %v633 = vrot.slane %v629, %v632
  %v650 = vunpack.c.l.b16 %v613
  %v651 = vunpack.c.l.b16 %v614
  %v652 = vunpack.c.l.b16 %v615
  %v653 = vunpack.c.l.b16 %v616
  %v654 = vunpack.c.l.b16 %v617
  %v655 = vunpack.c.l.b16 %v618
  %v656 = vunpack.c.l.b16 %v619
  %v657 = vunpack.c.l.b16 %v620
  %v658 = vunpack.c.l.b16 %v621
  %v659 = vunpack.c.l.b16 %v622
  %v660 = vunpack.c.l.b16 %v623
  %v661 = vunpack.c.l.b16 %v624
  %v662 = vunpack.c.l.b16 %v625
  %v663 = vunpack.c.l.b16 %v626
  %v664 = vunpack.c.l.b16 %v627
  %v665 = vunpack.c.l.b16 %v628
  %v666 = vpack.c.b16 %v651, %v650
  %v667 = vpack.c.b16 %v653, %v652
  %v668 = vpack.c.b16 %v655, %v654
  %v669 = vpack.c.b16 %v657, %v656
  %v670 = vpack.c.b16 %v659, %v658
  %v671 = vpack.c.b16 %v661, %v660
  %v672 = vpack.c.b16 %v663, %v662
  %v673 = vpack.c.b16 %v665, %v664
  %682 = vmatprep.subr.bf16.mxu0 0
  %683 = vmatpush1.bf16.msra.mxu0 %v673
  %684 = vmatprep.subr.bf16.mxu0 0
  %685 = vmatpush1.bf16.msra.mxu0 %v672
  %686 = vmatprep.subr.bf16.mxu0 0
  %687 = vmatpush1.bf16.msra.mxu0 %v671
  %688 = vmatprep.subr.bf16.mxu0 0
  %689 = vmatpush1.bf16.msra.mxu0 %v670
  %690 = vmatprep.subr.bf16.mxu0 0
  %691 = vmatpush1.bf16.msra.mxu0 %v669
  %692 = vmatprep.subr.bf16.mxu0 0
  %693 = vmatpush1.bf16.msra.mxu0 %v668
  %694 = vmatprep.subr.bf16.mxu0 0
  %695 = vmatpush1.bf16.msra.mxu0 %v667
  %696 = vmatprep.subr.bf16.mxu0 0
  %697 = vmatpush1.bf16.msra.mxu0 %v666
  %698 = vmatprep.subr.bf16.mxu0 0
  %699 = vmatpush2.bf16.msra.mxu0 0
  %700 = vmatprep.subr.bf16.mxu0 0
  %701 = vmatpush2.bf16.msra.mxu0 0
  %702 = vmatprep.subr.bf16.mxu0 0
  %703 = vmatpush2.bf16.msra.mxu0 0
  %704 = vmatprep.subr.bf16.mxu0 0
  %705 = vmatpush2.bf16.msra.mxu0 0
  %706 = vmatprep.subr.bf16.mxu0 0
  %707 = vmatpush2.bf16.msra.mxu0 0
  %708 = vmatprep.subr.bf16.mxu0 0
  %709 = vmatpush2.bf16.msra.mxu0 0
  %710 = vmatprep.subr.bf16.mxu0 0
  %711 = vmatpush2.bf16.msra.mxu0 0
  %712 = vmatprep.subr.bf16.mxu0 0
  %713 = vmatpush2.bf16.msra.mxu0 0
  %714 = vmatprep.mubr.bf16.mxu0 0
  %715 = vmatmul.mubr.bf16.gmra.mxu0 %v596
  %v716 = vpop.f32.mrf.mxu0
  %v717 = vadd.f32 %v633, %v716
  %v718 = vpop.f32.mrf.mxu0
  %v719 = vpop.f32.mrf.mxu0
  %v720 = vadd.f32 %v633, %v719
  %v721 = vpop.f32.mrf.mxu0
  %722 = vmatprep.mubr.bf16.mxu0 0
  %723 = vmatmul.mubr.bf16.gmra.mxu0 %v597
  %v724 = vpop.f32.mrf.mxu0
  %v725 = vadd.f32 %v633, %v724
  %v726 = vpop.f32.mrf.mxu0
  %v727 = vpop.f32.mrf.mxu0
  %v728 = vadd.f32 %v633, %v727
  %v729 = vpop.f32.mrf.mxu0
  %730 = vmatprep.mubr.bf16.mxu0 0
  %731 = vmatmul.mubr.bf16.gmra.mxu0 %v598
  %v732 = vpop.f32.mrf.mxu0
  %v733 = vadd.f32 %v633, %v732
  %v734 = vpop.f32.mrf.mxu0
  %v735 = vpop.f32.mrf.mxu0
  %v736 = vadd.f32 %v633, %v735
  %v737 = vpop.f32.mrf.mxu0
  %738 = vmatprep.mubr.bf16.mxu0 0
  %739 = vmatmul.mubr.bf16.gmra.mxu0 %v599
  %v740 = vpop.f32.mrf.mxu0
  %v741 = vadd.f32 %v633, %v740
  %v742 = vpop.f32.mrf.mxu0
  %v743 = vpop.f32.mrf.mxu0
  %v744 = vadd.f32 %v633, %v743
  %v745 = vpop.f32.mrf.mxu0
  %746 = vmatprep.mubr.bf16.mxu0 0
  %747 = vmatmul.mubr.bf16.gmra.mxu0 %v600
  %v748 = vpop.f32.mrf.mxu0
  %v749 = vadd.f32 %v633, %v748
  %v750 = vpop.f32.mrf.mxu0
  %v751 = vpop.f32.mrf.mxu0
  %v752 = vadd.f32 %v633, %v751
  %v753 = vpop.f32.mrf.mxu0
  %754 = vmatprep.mubr.bf16.mxu0 0
  %755 = vmatmul.mubr.bf16.gmra.mxu0 %v601
  %v756 = vpop.f32.mrf.mxu0
  %v757 = vadd.f32 %v633, %v756
  %v758 = vpop.f32.mrf.mxu0
  %v759 = vpop.f32.mrf.mxu0
  %v760 = vadd.f32 %v633, %v759
  %v761 = vpop.f32.mrf.mxu0
  %762 = vmatprep.mubr.bf16.mxu0 0
  %763 = vmatmul.mubr.bf16.gmra.mxu0 %v602
  %v764 = vpop.f32.mrf.mxu0
  %v765 = vadd.f32 %v633, %v764
  %v766 = vpop.f32.mrf.mxu0
  %v767 = vpop.f32.mrf.mxu0
  %v768 = vadd.f32 %v633, %v767
  %v769 = vpop.f32.mrf.mxu0
  %770 = vmatprep.mubr.bf16.mxu0 0
  %771 = vmatmul.mubr.bf16.gmra.mxu0 %v603
  %v772 = vpop.f32.mrf.mxu0
  %v773 = vadd.f32 %v633, %v772
  %v774 = vpop.f32.mrf.mxu0
  %v775 = vpop.f32.mrf.mxu0
  %v776 = vadd.f32 %v633, %v775
  %v777 = vpop.f32.mrf.mxu0
  %778 = vmatprep.mubr.bf16.mxu0 0
  %779 = vmatmul.mubr.bf16.gmra.mxu0 %v604
  %v780 = vpop.f32.mrf.mxu0
  %v781 = vadd.f32 %v633, %v780
  %v782 = vpop.f32.mrf.mxu0
  %v783 = vpop.f32.mrf.mxu0
  %v784 = vadd.f32 %v633, %v783
  %v785 = vpop.f32.mrf.mxu0
  %786 = vmatprep.mubr.bf16.mxu0 0
  %787 = vmatmul.mubr.bf16.gmra.mxu0 %v605
  %v788 = vpop.f32.mrf.mxu0
  %v789 = vadd.f32 %v633, %v788
  %v790 = vpop.f32.mrf.mxu0
  %v791 = vpop.f32.mrf.mxu0
  %v792 = vadd.f32 %v633, %v791
  %v793 = vpop.f32.mrf.mxu0
  %794 = vmatprep.mubr.bf16.mxu0 0
  %795 = vmatmul.mubr.bf16.gmra.mxu0 %v606
  %v796 = vpop.f32.mrf.mxu0
  %v797 = vadd.f32 %v633, %v796
  %v798 = vpop.f32.mrf.mxu0
  %v799 = vpop.f32.mrf.mxu0
  %v800 = vadd.f32 %v633, %v799
  %v801 = vpop.f32.mrf.mxu0
  %802 = vmatprep.mubr.bf16.mxu0 0
  %803 = vmatmul.mubr.bf16.gmra.mxu0 %v607
  %v804 = vpop.f32.mrf.mxu0
  %v805 = vadd.f32 %v633, %v804
  %v806 = vpop.f32.mrf.mxu0
  %v807 = vpop.f32.mrf.mxu0
  %v808 = vadd.f32 %v633, %v807
  %v809 = vpop.f32.mrf.mxu0
  %810 = vmatprep.mubr.bf16.mxu0 0
  %811 = vmatmul.mubr.bf16.gmra.mxu0 %v608
  %v812 = vpop.f32.mrf.mxu0
  %v813 = vadd.f32 %v633, %v812
  %v814 = vpop.f32.mrf.mxu0
  %v815 = vpop.f32.mrf.mxu0
  %v816 = vadd.f32 %v633, %v815
  %v817 = vpop.f32.mrf.mxu0
  %818 = vmatprep.mubr.bf16.mxu0 0
  %819 = vmatmul.mubr.bf16.gmra.mxu0 %v609
  %v820 = vpop.f32.mrf.mxu0
  %v821 = vadd.f32 %v633, %v820
  %v822 = vpop.f32.mrf.mxu0
  %v823 = vpop.f32.mrf.mxu0
  %v824 = vadd.f32 %v633, %v823
  %v825 = vpop.f32.mrf.mxu0
  %826 = vmatprep.mubr.bf16.mxu0 0
  %827 = vmatmul.mubr.bf16.gmra.mxu0 %v610
  %v828 = vpop.f32.mrf.mxu0
  %v829 = vadd.f32 %v633, %v828
  %v830 = vpop.f32.mrf.mxu0
  %v831 = vpop.f32.mrf.mxu0
  %v832 = vadd.f32 %v633, %v831
  %v833 = vpop.f32.mrf.mxu0
  %834 = vmatprep.mubr.bf16.mxu0 0
  %835 = vmatmul.mubr.bf16.gmra.mxu0 %v611
  %v836 = vpop.f32.mrf.mxu0
  %v837 = vadd.f32 %v633, %v836
  %v838 = vpop.f32.mrf.mxu0
  %v839 = vpop.f32.mrf.mxu0
  %v840 = vadd.f32 %v633, %v839
  %v841 = vpop.f32.mrf.mxu0
  %842 = vdwg.mxu0
  %843 = vst [vmem:[%s4] sm:$0xff] %v717
  %844 = vst [vmem:[%s4 + $0x8] sm:$0xff] %v720
  %845 = vst [vmem:[%s4 + $0x10] sm:$0xff] %v725
  %846 = vst [vmem:[%s4 + $0x18] sm:$0xff] %v728
  %847 = vst [vmem:[%s4 + $0x20] sm:$0xff] %v733
  %848 = vst [vmem:[%s4 + $0x28] sm:$0xff] %v736
  %849 = vst [vmem:[%s4 + $0x30] sm:$0xff] %v741
  %850 = vst [vmem:[%s4 + $0x38] sm:$0xff] %v744
  %851 = vst [vmem:[%s4 + $0x40] sm:$0xff] %v749
  %852 = vst [vmem:[%s4 + $0x48] sm:$0xff] %v752
  %853 = vst [vmem:[%s4 + $0x50] sm:$0xff] %v757
  %854 = vst [vmem:[%s4 + $0x58] sm:$0xff] %v760
  %855 = vst [vmem:[%s4 + $0x60] sm:$0xff] %v765
  %856 = vst [vmem:[%s4 + $0x68] sm:$0xff] %v768
  %857 = vst [vmem:[%s4 + $0x70] sm:$0xff] %v773
  %858 = vst [vmem:[%s4 + $0x78] sm:$0xff] %v776
  %859 = vst [vmem:[%s4 + $0x80] sm:$0xff] %v781
  %860 = vst [vmem:[%s4 + $0x88] sm:$0xff] %v784
  %861 = vst [vmem:[%s4 + $0x90] sm:$0xff] %v789
  %862 = vst [vmem:[%s4 + $0x98] sm:$0xff] %v792
  %863 = vst [vmem:[%s4 + $0xa0] sm:$0xff] %v797
  %864 = vst [vmem:[%s4 + $0xa8] sm:$0xff] %v800
  %865 = vst [vmem:[%s4 + $0xb0] sm:$0xff] %v805
  %866 = vst [vmem:[%s4 + $0xb8] sm:$0xff] %v808
  %867 = vst [vmem:[%s4 + $0xc0] sm:$0xff] %v813
  %868 = vst [vmem:[%s4 + $0xc8] sm:$0xff] %v816
  %869 = vst [vmem:[%s4 + $0xd0] sm:$0xff] %v821
  %870 = vst [vmem:[%s4 + $0xd8] sm:$0xff] %v824
  %871 = vst [vmem:[%s4 + $0xe0] sm:$0xff] %v829
  %872 = vst [vmem:[%s4 + $0xe8] sm:$0xff] %v832
  %873 = vst [vmem:[%s4 + $0xf0] sm:$0xff] %v837
  %874 = vst [vmem:[%s4 + $0xf8] sm:$0xff] %v840
  // Predicated region
  $region18: #{dqn_forward.1} parent=0 // pred_check
    _
  $region19: #{dqn_forward.1} parent=0 // pred_check_branch
    %876 = sbr.rel (0) target = $region21
  $region20: #{dqn_forward.1} parent=0 // pred_region
    _
  $region21: #{dqn_forward.1} parent=0 // pred_fallthru
    _
  // Predicated region
  $region22: #{dqn_forward.1} parent=0 // pred_check
    _
  $region23: #{dqn_forward.1} parent=0 // pred_check_branch
    %878 = sbr.rel (0) target = $region25
  $region24: #{dqn_forward.1} parent=0 // pred_region
    _
  $region25: #{dqn_forward.1} parent=0 // pred_fallthru
    _

</llo_original>
